<compile_context>
chip_gen: v7x
topology: tpu7x:2x2x1
jax: 0.10.0
libtpu: 0.0.40
codegen_flags: <defaults>
</compile_context>

<pallas_src>
import functools

import jax
import jax.numpy as jnp
from jax.experimental import pallas as pl
from jax.experimental.pallas import tpu as pltpu


def _round_up(n, m):
    return ((n + m - 1) // m) * m


def _vae_forward_kernel(
    x_ref,        # [TB, D_in]  f32
    eps_ref,      # [TB, L]     f32
    w1_ref,       # [D_in, L]   bf16
    b1_ref,       # [1, L]      f32
    wmv_ref,      # [L, 2L]     bf16   (fc_mu | fc_logvar fused)
    bmv_ref,      # [1, 2L]     f32
    wout_ref,     # [L, D_in]   bf16
    bout_ref,     # [1, D_in]   f32
    packed_ref,   # [TB, P]     f32    (recon | mu | logvar | zero pad)
    *,
    d_in,
    latent,
    packed_width,
):
    x = x_ref[...]

    # --- encode: h1 = relu(fc1(x)) ---
    h1 = (
        jnp.dot(x.astype(jnp.bfloat16), w1_ref[...],
                preferred_element_type=jnp.float32)
        + b1_ref[...]
    )
    h1 = jnp.maximum(h1, 0.0)  # activation == 'relu'

    # --- fused heads: [mu | logvar] = h1 @ [W_mu | W_logvar] + [b_mu | b_logvar]
    mulv = (
        jnp.dot(h1.astype(jnp.bfloat16), wmv_ref[...],
                preferred_element_type=jnp.float32)
        + bmv_ref[...]
    )
    mu = mulv[:, :latent]
    logvar = mulv[:, latent:]

    # --- reparameterize: z = mu + eps * exp(0.5 * logvar) ---
    std = jnp.exp(0.5 * logvar)
    z = mu + eps_ref[...] * std

    # --- decode (cat_var=True): softmax(fc_out(z), dim=1) ---
    logits = (
        jnp.dot(z.astype(jnp.bfloat16), wout_ref[...],
                preferred_element_type=jnp.float32)
        + bout_ref[...]
    )
    m = jnp.max(logits, axis=-1, keepdims=True)
    e = jnp.exp(logits - m)
    recon = e * pl.reciprocal(jnp.sum(e, axis=-1, keepdims=True), approx=True)

    # --- single lane-dense store: [recon | mu | logvar | zeros] ---
    pad_w = packed_width - (d_in + 2 * latent)
    pad = jnp.zeros((x.shape[0], pad_w), jnp.float32)
    packed_ref[...] = jnp.concatenate([recon, mulv, pad], axis=-1).astype(
        packed_ref.dtype
    )


def _pick_batch_tile(batch, max_tile=1024):
    """Largest batch tile <= max_tile that divides batch (multiple of 8 if tiled)."""
    if batch <= max_tile:
        return batch
    tb = max_tile - (max_tile % 8)
    while tb > 8 and batch % tb != 0:
        tb -= 8
    return tb if batch % tb == 0 else batch


def marginal_vae_forward(x, params, eps):
    """Full VAE forward pass in one Pallas invocation.

    x:   [B, D_in] float32
    eps: [B, L]    float32  (standard normal noise)
    params: dict with bf16 weights (pre-transposed [in, out]) and f32 biases.
    Returns (recon, mu, logvar) — all float32.
    """
    B, D_in = x.shape
    L = params["w1"].shape[1]
    P = _round_up(D_in + 2 * L, 128)   # lane-dense packed output width
    TB = _pick_batch_tile(B)
    grid = (B // TB,)

    kernel = functools.partial(
        _vae_forward_kernel, d_in=D_in, latent=L, packed_width=P
    )

    def batched(shape):
        return pl.BlockSpec(shape, lambda i: (i, 0))

    def resident(shape):
        return pl.BlockSpec(shape, lambda i: (0, 0))

    packed = pl.pallas_call(
        kernel,
        out_shape=jax.ShapeDtypeStruct((B, P), jnp.float32),
        grid=grid,
        in_specs=[
            batched((TB, D_in)),        # x
            batched((TB, L)),           # eps
            resident((D_in, L)),        # w1
            resident((1, L)),           # b1
            resident((L, 2 * L)),       # w_mulv  (fused mu|logvar)
            resident((1, 2 * L)),       # b_mulv
            resident((L, D_in)),        # w_out
            resident((1, D_in)),        # b_out
        ],
        out_specs=batched((TB, P)),
        compiler_params=pltpu.CompilerParams(
            dimension_semantics=("parallel",),
            vmem_limit_bytes=32 * 1024 * 1024,
        ),
    )(
        x,
        eps,
        params["w1"], params["b1"],
        params["w_mulv"], params["b_mulv"],
        params["w_out"], params["b_out"],
    )

    recon = packed[:, :D_in]
    mu = packed[:, D_in:D_in + L]
    logvar = packed[:, D_in + L:D_in + 2 * L]
    return recon, mu, logvar


def _init_params(key, input_dims, latent_dims):
    """Deterministic synthetic parameter init (PyTorch Linear-like scale).

    Weights are stored [in, out] in bfloat16 (MXU operands); biases stay f32.
    fc_mu / fc_logvar are fused into a single [L, 2L] weight.
    """
    ks = jax.random.split(key, 8)

    def lin(kw, kb, fan_in, fan_out):
        bound = 1.0 / jnp.sqrt(fan_in)
        w = jax.random.uniform(kw, (fan_in, fan_out), jnp.float32, -bound, bound)
        b = jax.random.uniform(kb, (1, fan_out), jnp.float32, -bound, bound)
        return w, b

    w1, b1 = lin(ks[0], ks[1], input_dims, latent_dims)
    w_mu, b_mu = lin(ks[2], ks[3], latent_dims, latent_dims)
    w_lv, b_lv = lin(ks[4], ks[5], latent_dims, latent_dims)
    w_out, b_out = lin(ks[6], ks[7], latent_dims, input_dims)

    w_mulv = jnp.concatenate([w_mu, w_lv], axis=1)
    b_mulv = jnp.concatenate([b_mu, b_lv], axis=1)

    bf = jnp.bfloat16
    return {
        "w1": w1.astype(bf), "b1": b1,
        "w_mulv": w_mulv.astype(bf), "b_mulv": b_mulv,
        "w_out": w_out.astype(bf), "b_out": b_out,
    }


def _reference_forward(x, params, eps):
    """Pure-JAX reference mirroring the kernel (relu, cat_var=True, bf16 matmul
    operands with f32 accumulation, exact softmax)."""
    bf = jnp.bfloat16
    L = params["w1"].shape[1]
    h1 = jax.nn.relu(
        jnp.dot(x.astype(bf), params["w1"], preferred_element_type=jnp.float32)
        + params["b1"]
    )
    mulv = (
        jnp.dot(h1.astype(bf), params["w_mulv"], preferred_element_type=jnp.float32)
        + params["b_mulv"]
    )
    mu, logvar = mulv[:, :L], mulv[:, L:]
    z = mu + eps * jnp.exp(0.5 * logvar)
    logits = (
        jnp.dot(z.astype(bf), params["w_out"], preferred_element_type=jnp.float32)
        + params["b_out"]
    )
    recon = jax.nn.softmax(logits, axis=1)
    return recon, mu, logvar


if __name__ == "__main__":
    key = jax.random.PRNGKey(0)
    k_x, k_eps, k_p = jax.random.split(key, 3)

    batch = 8
    input_dims = 16   # feature width of the marginal (one-hot) variable
    latent_dims = 8   # args.latent_dims

    x = jax.random.uniform(k_x, (batch, input_dims), jnp.float32)
    eps = jax.random.normal(k_eps, (batch, latent_dims), jnp.float32)
    params = _init_params(k_p, input_dims, latent_dims)

    recon, mu, logvar = marginal_vae_forward(x, params, eps)
    jax.block_until_ready((recon, mu, logvar))

    # sanity check vs pure-JAX reference (loosened for bf16 MXU operands and
    # approx reciprocal in the softmax denominator)
    r_ref, mu_ref, lv_ref = _reference_forward(x, params, eps)
    assert jnp.allclose(mu, mu_ref, atol=5e-3, rtol=5e-3)
    assert jnp.allclose(logvar, lv_ref, atol=5e-3, rtol=5e-3)
    assert jnp.allclose(recon, r_ref, atol=1e-2, rtol=1e-2)

    print("KERNEL_OK")
</pallas_src>

<mosaic_0001>
module attributes {stable_mosaic.version = 11 : i64} {
  func.func @_vae_forward_kernel(%arg0: i32, %arg1: memref<8x16xf32, #tpu.memory_space<vmem>>, %arg2: memref<8x8xf32, #tpu.memory_space<vmem>>, %arg3: memref<16x8xbf16, #tpu.memory_space<vmem>>, %arg4: memref<1x8xf32, #tpu.memory_space<vmem>>, %arg5: memref<8x16xbf16, #tpu.memory_space<vmem>>, %arg6: memref<1x16xf32, #tpu.memory_space<vmem>>, %arg7: memref<8x16xbf16, #tpu.memory_space<vmem>>, %arg8: memref<1x16xf32, #tpu.memory_space<vmem>>, %arg9: memref<8x128xf32, #tpu.memory_space<vmem>>) attributes {dimension_semantics = [#tpu.dimension_semantics<parallel>], iteration_bounds = array<i64: 1>, scalar_prefetch = 0 : i64, scratch_operands = 0 : i64, tpu.core_type = #tpu.core_type<tc>, window_params = [{transform_indices = @transform_0, window_bounds = array<i64: 8, 16>}, {transform_indices = @transform_1, window_bounds = array<i64: 8, 8>}, {pipeline_mode = #tpu.pipeline_mode<synchronous>, transform_indices = @transform_2, window_bounds = array<i64: 16, 8>}, {pipeline_mode = #tpu.pipeline_mode<synchronous>, transform_indices = @transform_3, window_bounds = array<i64: 1, 8>}, {pipeline_mode = #tpu.pipeline_mode<synchronous>, transform_indices = @transform_4, window_bounds = array<i64: 8, 16>}, {pipeline_mode = #tpu.pipeline_mode<synchronous>, transform_indices = @transform_5, window_bounds = array<i64: 1, 16>}, {pipeline_mode = #tpu.pipeline_mode<synchronous>, transform_indices = @transform_6, window_bounds = array<i64: 8, 16>}, {pipeline_mode = #tpu.pipeline_mode<synchronous>, transform_indices = @transform_7, window_bounds = array<i64: 1, 16>}, {transform_indices = @transform_8, window_bounds = array<i64: 8, 128>}]} {
    %c0 = arith.constant 0 : index
    %c0_0 = arith.constant 0 : index
    %0 = vector.load %arg1[%c0, %c0_0] : memref<8x16xf32, #tpu.memory_space<vmem>>, vector<8x16xf32>
    %1 = arith.truncf %0 : vector<8x16xf32> to vector<8x16xbf16>
    %c0_1 = arith.constant 0 : index
    %c0_2 = arith.constant 0 : index
    %2 = vector.load %arg3[%c0_1, %c0_2] : memref<16x8xbf16, #tpu.memory_space<vmem>>, vector<16x8xbf16>
    %cst = arith.constant dense<0.000000e+00> : vector<8x8xf32>
    %3 = tpu.matmul %1, %2, %cst {dimension_numbers = #tpu.dot_dimension_numbers<[1], [0], [0], [1], [0, 0, 1, 1], [], []>} : vector<8x16xbf16>, vector<16x8xbf16>, vector<8x8xf32> -> vector<8x8xf32>
    %c0_3 = arith.constant 0 : index
    %c0_4 = arith.constant 0 : index
    %4 = vector.load %arg4[%c0_3, %c0_4] : memref<1x8xf32, #tpu.memory_space<vmem>>, vector<1x8xf32>
    %5 = vector.broadcast %4 : vector<1x8xf32> to vector<8x8xf32>
    %6 = arith.addf %3, %5 : vector<8x8xf32>
    %cst_5 = arith.constant 0.000000e+00 : f32
    %7 = vector.broadcast %cst_5 : f32 to vector<8x8xf32>
    %8 = arith.maximumf %6, %7 : vector<8x8xf32>
    %9 = arith.truncf %8 : vector<8x8xf32> to vector<8x8xbf16>
    %c0_6 = arith.constant 0 : index
    %c0_7 = arith.constant 0 : index
    %10 = vector.load %arg5[%c0_6, %c0_7] : memref<8x16xbf16, #tpu.memory_space<vmem>>, vector<8x16xbf16>
    %cst_8 = arith.constant dense<0.000000e+00> : vector<8x16xf32>
    %11 = tpu.matmul %9, %10, %cst_8 {dimension_numbers = #tpu.dot_dimension_numbers<[1], [0], [0], [1], [0, 0, 1, 1], [], []>} : vector<8x8xbf16>, vector<8x16xbf16>, vector<8x16xf32> -> vector<8x16xf32>
    %c0_9 = arith.constant 0 : index
    %c0_10 = arith.constant 0 : index
    %12 = vector.load %arg6[%c0_9, %c0_10] : memref<1x16xf32, #tpu.memory_space<vmem>>, vector<1x16xf32>
    %13 = vector.broadcast %12 : vector<1x16xf32> to vector<8x16xf32>
    %14 = arith.addf %11, %13 : vector<8x16xf32>
    %15 = vector.extract_strided_slice %14 {offsets = [0, 0], sizes = [8, 8], strides = [1, 1]} : vector<8x16xf32> to vector<8x8xf32>
    %16 = vector.extract_strided_slice %14 {offsets = [0, 8], sizes = [8, 8], strides = [1, 1]} : vector<8x16xf32> to vector<8x8xf32>
    %cst_11 = arith.constant 5.000000e-01 : f32
    %17 = vector.broadcast %cst_11 : f32 to vector<8x8xf32>
    %18 = arith.mulf %17, %16 : vector<8x8xf32>
    %19 = math.exp %18 : vector<8x8xf32>
    %c0_12 = arith.constant 0 : index
    %c0_13 = arith.constant 0 : index
    %20 = vector.load %arg2[%c0_12, %c0_13] : memref<8x8xf32, #tpu.memory_space<vmem>>, vector<8x8xf32>
    %21 = arith.mulf %20, %19 : vector<8x8xf32>
    %22 = arith.addf %15, %21 : vector<8x8xf32>
    %23 = arith.truncf %22 : vector<8x8xf32> to vector<8x8xbf16>
    %c0_14 = arith.constant 0 : index
    %c0_15 = arith.constant 0 : index
    %24 = vector.load %arg7[%c0_14, %c0_15] : memref<8x16xbf16, #tpu.memory_space<vmem>>, vector<8x16xbf16>
    %cst_16 = arith.constant dense<0.000000e+00> : vector<8x16xf32>
    %25 = tpu.matmul %23, %24, %cst_16 {dimension_numbers = #tpu.dot_dimension_numbers<[1], [0], [0], [1], [0, 0, 1, 1], [], []>} : vector<8x8xbf16>, vector<8x16xbf16>, vector<8x16xf32> -> vector<8x16xf32>
    %c0_17 = arith.constant 0 : index
    %c0_18 = arith.constant 0 : index
    %26 = vector.load %arg8[%c0_17, %c0_18] : memref<1x16xf32, #tpu.memory_space<vmem>>, vector<1x16xf32>
    %27 = vector.broadcast %26 : vector<1x16xf32> to vector<8x16xf32>
    %28 = arith.addf %25, %27 : vector<8x16xf32>
    %cst_19 = arith.constant dense<0xFF800000> : vector<8xf32>
    %29 = vector.multi_reduction <maximumf>, %28, %cst_19 [1] : vector<8x16xf32> to vector<8xf32>
    %30 = vector.shape_cast %29 : vector<8xf32> to vector<8x1xf32>
    %31 = vector.broadcast %30 : vector<8x1xf32> to vector<8x16xf32>
    %32 = arith.subf %28, %31 : vector<8x16xf32>
    %33 = math.exp %32 : vector<8x16xf32>
    %cst_20 = arith.constant dense<0.000000e+00> : vector<8xf32>
    %34 = vector.multi_reduction <add>, %33, %cst_20 [1] : vector<8x16xf32> to vector<8xf32>
    %35 = vector.shape_cast %34 : vector<8xf32> to vector<8x1xf32>
    %36 = tpu.reciprocal %35 {approx = true} : vector<8x1xf32> -> vector<8x1xf32>
    %37 = vector.broadcast %36 : vector<8x1xf32> to vector<8x16xf32>
    %38 = arith.mulf %33, %37 : vector<8x16xf32>
    %cst_21 = arith.constant 0.000000e+00 : f32
    %39 = vector.broadcast %cst_21 : f32 to vector<8x96xf32>
    %40 = tpu.concatenate %38, %14, %39 in 1 : vector<8x16xf32>, vector<8x16xf32>, vector<8x96xf32> -> vector<8x128xf32>
    %c0_22 = arith.constant 0 : index
    %c0_23 = arith.constant 0 : index
    %41 = vector.load %arg9[%c0_22, %c0_23] : memref<8x128xf32, #tpu.memory_space<vmem>>, vector<8x128xf32>
    tpu.vector_store %arg9[%c0_22, %c0_23], %40 {strides = array<i32>} : memref<8x128xf32, #tpu.memory_space<vmem>>, vector<8x128xf32>,
    return
  }
  func.func @transform_0(%arg0: i32) -> (i32, i32) {
    %c0_i32 = arith.constant 0 : i32
    %c0_i32_0 = arith.constant 0 : i32
    return %arg0, %c0_i32 : i32, i32
  }
  func.func @transform_1(%arg0: i32) -> (i32, i32) {
    %c0_i32 = arith.constant 0 : i32
    %c0_i32_0 = arith.constant 0 : i32
    return %arg0, %c0_i32 : i32, i32
  }
  func.func @transform_2(%arg0: i32) -> (i32, i32) {
    %c0_i32 = arith.constant 0 : i32
    %c0_i32_0 = arith.constant 0 : i32
    %c0_i32_1 = arith.constant 0 : i32
    return %c0_i32, %c0_i32_0 : i32, i32
  }
  func.func @transform_3(%arg0: i32) -> (i32, i32) {
    %c0_i32 = arith.constant 0 : i32
    %c0_i32_0 = arith.constant 0 : i32
    %c0_i32_1 = arith.constant 0 : i32
    return %c0_i32, %c0_i32_0 : i32, i32
  }
  func.func @transform_4(%arg0: i32) -> (i32, i32) {
    %c0_i32 = arith.constant 0 : i32
    %c0_i32_0 = arith.constant 0 : i32
    %c0_i32_1 = arith.constant 0 : i32
    return %c0_i32, %c0_i32_0 : i32, i32
  }
  func.func @transform_5(%arg0: i32) -> (i32, i32) {
    %c0_i32 = arith.constant 0 : i32
    %c0_i32_0 = arith.constant 0 : i32
    %c0_i32_1 = arith.constant 0 : i32
    return %c0_i32, %c0_i32_0 : i32, i32
  }
  func.func @transform_6(%arg0: i32) -> (i32, i32) {
    %c0_i32 = arith.constant 0 : i32
    %c0_i32_0 = arith.constant 0 : i32
    %c0_i32_1 = arith.constant 0 : i32
    return %c0_i32, %c0_i32_0 : i32, i32
  }
  func.func @transform_7(%arg0: i32) -> (i32, i32) {
    %c0_i32 = arith.constant 0 : i32
    %c0_i32_0 = arith.constant 0 : i32
    %c0_i32_1 = arith.constant 0 : i32
    return %c0_i32, %c0_i32_0 : i32, i32
  }
  func.func @transform_8(%arg0: i32) -> (i32, i32) {
    %c0_i32 = arith.constant 0 : i32
    %c0_i32_0 = arith.constant 0 : i32
    return %arg0, %c0_i32 : i32, i32
  }
}

</mosaic_0001>

<llo_original>
// kernel: tpu_custom_call.1
$region0: #{tpu_custom_call.1}
  #allocation0 [shape = 'u32[]', space=smem, size = 0x4, offset = 0x4, fixed_abs, tag = 'smem constant byte address 0x4 - core index']
  #allocation1 [shape = 'u32[144,128]{1,0:T(1,128)}', space=vmem, size = 0x12000, scoped, tag = 'internal scratch']
  %s0 = inlined_call_operand.vmem [shape: f32[8,16], index: 0, kind: input, shape index: {}]
  %s1 = inlined_call_operand.hbm [shape: f32[8,8], index: 1, kind: input, shape index: {}]
  %s2 = inlined_call_operand.vmem [shape: bf16[16,8], index: 2, kind: input, shape index: {}]
  %s3 = inlined_call_operand.vmem [shape: f32[1,8], index: 3, kind: input, shape index: {}]
  %s4 = inlined_call_operand.vmem [shape: bf16[8,16], index: 4, kind: input, shape index: {}]
  %s5 = inlined_call_operand.vmem [shape: f32[1,16], index: 5, kind: input, shape index: {}]
  %s6 = inlined_call_operand.vmem [shape: bf16[8,16], index: 6, kind: input, shape index: {}]
  %s7 = inlined_call_operand.vmem [shape: f32[1,16], index: 7, kind: input, shape index: {}]
  %s8 = inlined_call_operand.hbm [shape: f32[8,128], index: 8, kind: output, shape index: {}]
  %s9 = sld [smem:[#allocation0]]
  $region46: #{tpu_custom_call.1} parent=0
    _
  %s11 = ssub.s32 1, %s9
  %s12 = scalar_select 0, %s11, %s9
  $region1: #{tpu_custom_call.1} parent=0
    #allocation2 [shape = 'u8[4096]{0}', space=vmem, size = 0x1000, scoped, tag = 'input window, operand 1, single buffered']
    #allocation3 [shape = 's32[1]{0}', space=sflag, size = 0x4, scoped, tag = 'scoped memory for tpu_custom_call.1']
    #allocation4 [shape = 's32[1]{0}', space=sflag, size = 0x4, scoped, tag = 'scoped memory for tpu_custom_call.1']
    #allocation5 [shape = 'u8[4096]{0}', space=vmem, size = 0x1000, scoped, tag = 'output window, operand 0, single buffered']
    %13 = vsyncpa [#allocation3], 0
    %14 = vsyncpa [#allocation4], 0
    // Predicated region
    $region2: #{tpu_custom_call.1} parent=1 // pred_check
      _
    $region3: #{tpu_custom_call.1} parent=1 // pred_check_branch
      %16 = sbr.rel (0) target = $region5
    $region4: #{tpu_custom_call.1} parent=1 // pred_region
      _
    $region5: #{tpu_custom_call.1} parent=1 // pred_fallthru
      _
    // Predicated region
    $region6: #{tpu_custom_call.1} parent=1 // pred_check
      _
    $region7: #{tpu_custom_call.1} parent=1 // pred_check_branch
      %18 = sbr.rel (0) target = $region9
    $region8: #{tpu_custom_call.1} parent=1 // pred_region
      %s20 = ssub.s32 128, 128
      %21 = vsyncadd [#allocation3], %s20
      %s23 = sshll.u32 [#allocation2], 4
      %s24 = int_to_ptr.vmem [resolvable:$true] %s23
      %26 = dma.hbm_to_vmem [thread:$0]  %s1, 128, %s24, [#allocation3]
    $region9: #{tpu_custom_call.1} parent=1 // pred_fallthru
      _
    // Predicated region
    $region10: #{tpu_custom_call.1} parent=1 // pred_check
      _
    $region11: #{tpu_custom_call.1} parent=1 // pred_check_branch
      %28 = sbr.rel (0) target = $region13
    $region12: #{tpu_custom_call.1} parent=1 // pred_region
      _
    $region13: #{tpu_custom_call.1} parent=1 // pred_fallthru
      _
    // Predicated region
    $region14: #{tpu_custom_call.1} parent=1 // pred_check
      _
    $region15: #{tpu_custom_call.1} parent=1 // pred_check_branch
      %30 = sbr.rel (0) target = $region17
    $region16: #{tpu_custom_call.1} parent=1 // pred_region
      _
    $region17: #{tpu_custom_call.1} parent=1 // pred_fallthru
      _
    // Predicated region
    $region18: #{tpu_custom_call.1} parent=1 // pred_check
      _
    $region19: #{tpu_custom_call.1} parent=1 // pred_check_branch
      %32 = sbr.rel (0) target = $region21
    $region20: #{tpu_custom_call.1} parent=1 // pred_region
      _
    $region21: #{tpu_custom_call.1} parent=1 // pred_fallthru
      _
    // Predicated region
    $region22: #{tpu_custom_call.1} parent=1 // pred_check
      _
    $region23: #{tpu_custom_call.1} parent=1 // pred_check_branch
      %34 = sbr.rel (0) target = $region25
    $region24: #{tpu_custom_call.1} parent=1 // pred_region
      _
    $region25: #{tpu_custom_call.1} parent=1 // pred_fallthru
      _
    // Predicated region
    $region26: #{tpu_custom_call.1} parent=1 // pred_check
      _
    $region27: #{tpu_custom_call.1} parent=1 // pred_check_branch
      %36 = sbr.rel (0) target = $region29
    $region28: #{tpu_custom_call.1} parent=1 // pred_region
      _
    $region29: #{tpu_custom_call.1} parent=1 // pred_fallthru
      _
    // Predicated region
    $region30: #{tpu_custom_call.1} parent=1 // pred_check
      _
    $region31: #{tpu_custom_call.1} parent=1 // pred_check_branch
      %38 = sbr.rel (0) target = $region33
    $region32: #{tpu_custom_call.1} parent=1 // pred_region
      _
    $region33: #{tpu_custom_call.1} parent=1 // pred_fallthru
      _
    // Predicated region
    $region34: #{tpu_custom_call.1} parent=1 // pred_check
      _
    $region35: #{tpu_custom_call.1} parent=1 // pred_check_branch
      %40 = sbr.rel (0) target = $region37
    $region36: #{tpu_custom_call.1} parent=1 // pred_region
      %41 = dma.done [#allocation3], 128
    $region37: #{tpu_custom_call.1} parent=1 // pred_fallthru
      _
    %v43 = vld [vmem:[%s0] sm:$0xff]
    %v44 = vpack.c.bf16 %v43, %v43
    %v45 = vld [vmem:[%s2] sm:$0xf]
    %v46 = vld [vmem:[%s2 + $0x4] sm:$0xf]
    %v47 = vld [vmem:[%s3] sm:$0x1]
    %v49 = vlaneseq
    %v50 = vshrl.u32 %v49, 7
    %v51 = vsub.s32 0, %v50
    %v52 = vrot.slane %v47, %v51
    %v56 = vunpack.c.l.b16 %v45
    %v57 = vunpack.c.l.b16 %v46
    %v58 = vpack.c.b16 %v57, %v56
    %vm60 = vcmask 130048
    %v62 = vsel %vm60, %v44, 0
    %64 = vmatprep.subr.bf16.mxu0 0
    %65 = vmatpush1.bf16.msra.mxu0 %v58
    %66 = vmatprep.subr.bf16.mxu0 0
    %67 = vmatpush1.bf16.msra.mxu0 0
    %68 = vmatprep.subr.bf16.mxu0 0
    %69 = vmatpush1.bf16.msra.mxu0 0
    %70 = vmatprep.subr.bf16.mxu0 0
    %71 = vmatpush1.bf16.msra.mxu0 0
    %72 = vmatprep.subr.bf16.mxu0 0
    %73 = vmatpush1.bf16.msra.mxu0 0
    %74 = vmatprep.subr.bf16.mxu0 0
    %75 = vmatpush1.bf16.msra.mxu0 0
    %76 = vmatprep.subr.bf16.mxu0 0
    %77 = vmatpush1.bf16.msra.mxu0 0
    %78 = vmatprep.subr.bf16.mxu0 0
    %79 = vmatpush1.bf16.msra.mxu0 0
    %80 = vmatprep.subr.bf16.mxu0 0
    %81 = vmatpush1.bf16.msra.mxu0 0
    %82 = vmatprep.subr.bf16.mxu0 0
    %83 = vmatpush1.bf16.msra.mxu0 0
    %84 = vmatprep.subr.bf16.mxu0 0
    %85 = vmatpush1.bf16.msra.mxu0 0
    %86 = vmatprep.subr.bf16.mxu0 0
    %87 = vmatpush1.bf16.msra.mxu0 0
    %88 = vmatprep.subr.bf16.mxu0 0
    %89 = vmatpush1.bf16.msra.mxu0 0
    %90 = vmatprep.subr.bf16.mxu0 0
    %91 = vmatpush1.bf16.msra.mxu0 0
    %92 = vmatprep.subr.bf16.mxu0 0
    %93 = vmatpush1.bf16.msra.mxu0 0
    %94 = vmatprep.subr.bf16.mxu0 0
    %95 = vmatpush1.bf16.msra.mxu0 0
    %96 = vmatprep.mubr.bf16.mxu0 0
    %97 = vmatmul.mubr.bf16.gmra.mrb[0].mxu0 %v62
    %v98 = vpop.f32.mrb[0].mxu0
    %v99 = vadd.f32 %v52, %v98
    %v100 = vpop.f32.mrb[0].mxu0
    %v101 = vpop.f32.mrb[0].mxu0
    %v102 = vpop.f32.mrb[0].mxu0
    %103 = vdwg.mxu0
    %v104 = vmax.f32 %v99, 0.0
    %v105 = vpack.c.bf16 %v104, %v104
    %v106 = vld [vmem:[%s4] sm:$0xf]
    %v107 = vld [vmem:[%s5] sm:$0x1]
    %v109 = vlaneseq
    %v110 = vshrl.u32 %v109, 7
    %v111 = vsub.s32 0, %v110
    %v112 = vrot.slane %v107, %v111
    %vm114 = vcmask 64512
    %v116 = vsel %vm114, %v105, 0
    %vm118 = vcmask 1043456
    %v120 = vsel %vm118, %v106, 0
    %122 = vmatprep.subr.bf16.mxu0 0
    %123 = vmatpush1.bf16.msra.mxu0 %v120
    %124 = vmatprep.subr.bf16.mxu0 0
    %125 = vmatpush1.bf16.msra.mxu0 0
    %126 = vmatprep.subr.bf16.mxu0 0
    %127 = vmatpush1.bf16.msra.mxu0 0
    %128 = vmatprep.subr.bf16.mxu0 0
    %129 = vmatpush1.bf16.msra.mxu0 0
    %130 = vmatprep.subr.bf16.mxu0 0
    %131 = vmatpush1.bf16.msra.mxu0 0
    %132 = vmatprep.subr.bf16.mxu0 0
    %133 = vmatpush1.bf16.msra.mxu0 0
    %134 = vmatprep.subr.bf16.mxu0 0
    %135 = vmatpush1.bf16.msra.mxu0 0
    %136 = vmatprep.subr.bf16.mxu0 0
    %137 = vmatpush1.bf16.msra.mxu0 0
    %138 = vmatprep.subr.bf16.mxu0 0
    %139 = vmatpush1.bf16.msra.mxu0 0
    %140 = vmatprep.subr.bf16.mxu0 0
    %141 = vmatpush1.bf16.msra.mxu0 0
    %142 = vmatprep.subr.bf16.mxu0 0
    %143 = vmatpush1.bf16.msra.mxu0 0
    %144 = vmatprep.subr.bf16.mxu0 0
    %145 = vmatpush1.bf16.msra.mxu0 0
    %146 = vmatprep.subr.bf16.mxu0 0
    %147 = vmatpush1.bf16.msra.mxu0 0
    %148 = vmatprep.subr.bf16.mxu0 0
    %149 = vmatpush1.bf16.msra.mxu0 0
    %150 = vmatprep.subr.bf16.mxu0 0
    %151 = vmatpush1.bf16.msra.mxu0 0
    %152 = vmatprep.subr.bf16.mxu0 0
    %153 = vmatpush1.bf16.msra.mxu0 0
    %154 = vmatprep.mubr.bf16.mxu0 0
    %155 = vmatmul.mubr.bf16.gmra.mrb[0].mxu0 %v116
    %v156 = vpop.f32.mrb[0].mxu0
    %v157 = vadd.f32 %v112, %v156
    %v158 = vpop.f32.mrb[0].mxu0
    %v159 = vpop.f32.mrb[0].mxu0
    %v160 = vpop.f32.mrb[0].mxu0
    %161 = vdwg.mxu0
    %v162 = vmul.f32 %v157, 0.5
    %v163 = vmul.f32 %v162, 1.442695
    %v164 = vpow.pop %v163
    %v165 = vld [vmem:[#allocation2] sm:$0xff]
    %167 = vrot.lane.b32.xlu0 %v164, 120
    %v168 = vpop.permute.xlu0 %167
    %v170 = vmul.f32 %v165, %v168
    %v171 = vadd.f32 %v157, %v170
    %v172 = vpack.c.bf16 %v171, %v171
    %v173 = vld [vmem:[%s6] sm:$0xf]
    %v174 = vld [vmem:[%s7] sm:$0x1]
    %v176 = vlaneseq
    %v177 = vshrl.u32 %v176, 7
    %v178 = vsub.s32 0, %v177
    %v179 = vrot.slane %v174, %v178
    %v182 = vsel %vm114, %v172, 0
    %v185 = vsel %vm118, %v173, 0
    %187 = vmatprep.subr.bf16.mxu0 0
    %188 = vmatpush1.bf16.msra.mxu0 %v185
    %189 = vmatprep.subr.bf16.mxu0 0
    %190 = vmatpush1.bf16.msra.mxu0 0
    %191 = vmatprep.subr.bf16.mxu0 0
    %192 = vmatpush1.bf16.msra.mxu0 0
    %193 = vmatprep.subr.bf16.mxu0 0
    %194 = vmatpush1.bf16.msra.mxu0 0
    %195 = vmatprep.subr.bf16.mxu0 0
    %196 = vmatpush1.bf16.msra.mxu0 0
    %197 = vmatprep.subr.bf16.mxu0 0
    %198 = vmatpush1.bf16.msra.mxu0 0
    %199 = vmatprep.subr.bf16.mxu0 0
    %200 = vmatpush1.bf16.msra.mxu0 0
    %201 = vmatprep.subr.bf16.mxu0 0
    %202 = vmatpush1.bf16.msra.mxu0 0
    %203 = vmatprep.subr.bf16.mxu0 0
    %204 = vmatpush1.bf16.msra.mxu0 0
    %205 = vmatprep.subr.bf16.mxu0 0
    %206 = vmatpush1.bf16.msra.mxu0 0
    %207 = vmatprep.subr.bf16.mxu0 0
    %208 = vmatpush1.bf16.msra.mxu0 0
    %209 = vmatprep.subr.bf16.mxu0 0
    %210 = vmatpush1.bf16.msra.mxu0 0
    %211 = vmatprep.subr.bf16.mxu0 0
    %212 = vmatpush1.bf16.msra.mxu0 0
    %213 = vmatprep.subr.bf16.mxu0 0
    %214 = vmatpush1.bf16.msra.mxu0 0
    %215 = vmatprep.subr.bf16.mxu0 0
    %216 = vmatpush1.bf16.msra.mxu0 0
    %217 = vmatprep.subr.bf16.mxu0 0
    %218 = vmatpush1.bf16.msra.mxu0 0
    %219 = vmatprep.mubr.bf16.mxu0 0
    %220 = vmatmul.mubr.bf16.gmra.mrb[0].mxu0 %v182
    %v221 = vpop.f32.mrb[0].mxu0
    %v222 = vadd.f32 %v179, %v221
    %v223 = vpop.f32.mrb[0].mxu0
    %v224 = vpop.f32.mrb[0].mxu0
    %v225 = vpop.f32.mrb[0].mxu0
    %226 = vdwg.mxu0
    %v227 = vsel %vm60, %v222, -inf
    %228 = vmax.xlane.f32.xlu0 %v227
    %v229 = vpop.xlane.xlu0 %228
    %v230 = vsub.f32 %v222, %v229
    %v231 = vmul.f32 %v230, 1.442695
    %v232 = vpow.pop %v231
    %v233 = vsel %vm60, %v232, 0.0
    %234 = vadd.xlane.f32.xlu0 %v233
    %v235 = vpop.xlane.xlu0 %234
    %v236 = vrcp.pop %v235
    %v237 = vmul.f32 %v232, %v236
    %239 = vrot.lane.b32.xlu0 %v157, 16
    %v240 = vpop.permute.xlu0 %239
    %v242 = vsel %vm60, %v237, %v240
    %vm243 = vcmask 261120
    %v244 = vsel %vm243, %v242, 0.0
    %245 = vst [vmem:[#allocation5] sm:$0xff] %v244
    // Predicated region
    $region38: #{tpu_custom_call.1} parent=1 // pred_check
      _
    $region39: #{tpu_custom_call.1} parent=1 // pred_check_branch
      %247 = sbr.rel (0) target = $region41
    $region40: #{tpu_custom_call.1} parent=1 // pred_region
      %s249 = ssub.s32 128, 128
      %250 = vsyncadd [#allocation4], %s249
      %s252 = sshll.u32 [#allocation5], 4
      %s253 = int_to_ptr.vmem [resolvable:$true] %s252
      %255 = dma.vmem_to_hbm [thread:$0]  %s253, 128, %s8, [#allocation4]
    $region41: #{tpu_custom_call.1} parent=1 // pred_fallthru
      _
    // Predicated region
    $region42: #{tpu_custom_call.1} parent=1 // pred_check
      _
    $region43: #{tpu_custom_call.1} parent=1 // pred_check_branch
      %257 = sbr.rel (0) target = $region45
    $region44: #{tpu_custom_call.1} parent=1 // pred_region
      %258 = dma.done [#allocation4], 128
    $region45: #{tpu_custom_call.1} parent=1 // pred_fallthru
      _
    %259 = vsyncpa [#allocation3], 1
    %260 = vsyncpa [#allocation4], 1

</llo_original>
